<compile_context>
chip_gen: v7x
topology: tpu7x:2x2x1
jax: 0.10.0
libtpu: 0.0.40
codegen_flags: <defaults>
</compile_context>

<pallas_src>
import math

import jax
import jax.numpy as jnp
from jax.experimental import pallas as pl
from jax.experimental.pallas import tpu as pltpu


# ----------------------------------------------------------------------------
# Fused kernel: relu(x @ w1t) @ w2t -> log_softmax (rows)
# ----------------------------------------------------------------------------
def _policy_kernel(x_ref, w1_ref, w2_ref, o_ref):
    x = x_ref[...].astype(jnp.float32)                      # (tb, D_in)
    h = jnp.dot(x, w1_ref[...], preferred_element_type=jnp.float32)
    h = jnp.maximum(h, 0.0)                                 # (tb, H)
    s = jnp.dot(h, w2_ref[...], preferred_element_type=jnp.float32)  # (tb, C)
    # numerically-stable log_softmax along the last (class) axis
    m = jnp.max(s, axis=-1, keepdims=True)
    z = s - m
    lse = jnp.log(jnp.sum(jnp.exp(z), axis=-1, keepdims=True))
    o_ref[...] = (z - lse).astype(o_ref.dtype)


def policy_forward(params, x, block_b=256):
    """x: (B, 4) float32 -> (B, 2) log-probabilities."""
    w1t = params['w1'].T                                    # (4, 128)
    w2t = params['w2'].T                                    # (128, 2)
    B, d_in = x.shape
    h_dim = w1t.shape[1]
    n_out = w2t.shape[1]

    if B <= block_b:
        # single full-array block: no padding, no masked M tiles
        tb = B
        xp = x
        grid = (1,)
    else:
        tb = block_b
        bp = pl.cdiv(B, tb) * tb
        xp = jnp.pad(x, ((0, bp - B), (0, 0)))
        grid = (bp // tb,)

    out = pl.pallas_call(
        _policy_kernel,
        out_shape=jax.ShapeDtypeStruct((xp.shape[0], n_out), jnp.float32),
        grid=grid,
        in_specs=[
            pl.BlockSpec((tb, d_in), lambda i: (i, 0)),
            pl.BlockSpec((d_in, h_dim), lambda i: (0, 0)),
            pl.BlockSpec((h_dim, n_out), lambda i: (0, 0)),
        ],
        out_specs=pl.BlockSpec((tb, n_out), lambda i: (i, 0)),
        compiler_params=pltpu.CompilerParams(
            dimension_semantics=("parallel",)),
    )(xp, w1t, w2t)
    return out[:B]


# ----------------------------------------------------------------------------
# Parameter init (mirrors nn.Linear default: U(-1/sqrt(fan_in), 1/sqrt(fan_in)))
# ----------------------------------------------------------------------------
def make_policy_params(key):
    k1, k2 = jax.random.split(key)
    b1 = 1.0 / math.sqrt(4.0)
    b2 = 1.0 / math.sqrt(128.0)
    w1 = jax.random.uniform(k1, (128, 4), jnp.float32, -b1, b1)   # affine1
    w2 = jax.random.uniform(k2, (2, 128), jnp.float32, -b2, b2)   # affine2
    return {'w1': w1, 'w2': w2}


# ----------------------------------------------------------------------------
# Pure-JAX reference for correctness check
# ----------------------------------------------------------------------------
def _policy_ref(params, x):
    h = jnp.maximum(x @ params['w1'].T, 0.0)
    s = h @ params['w2'].T
    return jax.nn.log_softmax(s, axis=1)


# ----------------------------------------------------------------------------
if __name__ == "__main__":
    key = jax.random.PRNGKey(0)
    kp, kx = jax.random.split(key)

    params = make_policy_params(kp)
    x = jax.random.normal(kx, (2, 4), jnp.float32)   # batch=2, state dim=4

    out = policy_forward(params, x)
    out = jax.block_until_ready(out)

    assert out.shape == (2, 2), out.shape
    assert bool(jnp.all(jnp.isfinite(out)))
    # valid log-probabilities: rows exponentiate-and-sum to 1
    assert bool(jnp.allclose(jnp.sum(jnp.exp(out), axis=1), 1.0, atol=1e-5))
    # matches the pure-JAX reference
    ref = _policy_ref(params, x)
    assert bool(jnp.allclose(out, ref, atol=1e-5, rtol=1e-5))

    print("KERNEL_OK")
</pallas_src>

<mosaic_0001>
module attributes {stable_mosaic.version = 11 : i64} {
  func.func @_policy_kernel(%arg0: i32, %arg1: memref<2x4xf32, #tpu.memory_space<vmem>>, %arg2: memref<4x128xf32, #tpu.memory_space<vmem>>, %arg3: memref<128x2xf32, #tpu.memory_space<vmem>>, %arg4: memref<2x2xf32, #tpu.memory_space<vmem>>) attributes {dimension_semantics = [#tpu.dimension_semantics<parallel>], iteration_bounds = array<i64: 1>, scalar_prefetch = 0 : i64, scratch_operands = 0 : i64, tpu.core_type = #tpu.core_type<tc>, window_params = [{transform_indices = @transform_0, window_bounds = array<i64: 2, 4>}, {pipeline_mode = #tpu.pipeline_mode<synchronous>, transform_indices = @transform_1, window_bounds = array<i64: 4, 128>}, {pipeline_mode = #tpu.pipeline_mode<synchronous>, transform_indices = @transform_2, window_bounds = array<i64: 128, 2>}, {transform_indices = @transform_3, window_bounds = array<i64: 2, 2>}]} {
    %c0 = arith.constant 0 : index
    %c0_0 = arith.constant 0 : index
    %0 = vector.load %arg1[%c0, %c0_0] : memref<2x4xf32, #tpu.memory_space<vmem>>, vector<2x4xf32>
    %c0_1 = arith.constant 0 : index
    %c0_2 = arith.constant 0 : index
    %1 = vector.load %arg2[%c0_1, %c0_2] : memref<4x128xf32, #tpu.memory_space<vmem>>, vector<4x128xf32>
    %cst = arith.constant dense<0.000000e+00> : vector<2x128xf32>
    %2 = tpu.matmul %0, %1, %cst {dimension_numbers = #tpu.dot_dimension_numbers<[1], [0], [0], [1], [0, 0, 1, 1], [], []>} : vector<2x4xf32>, vector<4x128xf32>, vector<2x128xf32> -> vector<2x128xf32>
    %cst_3 = arith.constant 0.000000e+00 : f32
    %3 = vector.broadcast %cst_3 : f32 to vector<2x128xf32>
    %4 = arith.maximumf %2, %3 : vector<2x128xf32>
    %c0_4 = arith.constant 0 : index
    %c0_5 = arith.constant 0 : index
    %5 = vector.load %arg3[%c0_4, %c0_5] : memref<128x2xf32, #tpu.memory_space<vmem>>, vector<128x2xf32>
    %cst_6 = arith.constant dense<0.000000e+00> : vector<2x2xf32>
    %6 = tpu.matmul %4, %5, %cst_6 {dimension_numbers = #tpu.dot_dimension_numbers<[1], [0], [0], [1], [0, 0, 1, 1], [], []>} : vector<2x128xf32>, vector<128x2xf32>, vector<2x2xf32> -> vector<2x2xf32>
    %cst_7 = arith.constant dense<0xFF800000> : vector<2xf32>
    %7 = vector.multi_reduction <maximumf>, %6, %cst_7 [1] : vector<2x2xf32> to vector<2xf32>
    %8 = vector.shape_cast %7 : vector<2xf32> to vector<2x1xf32>
    %9 = vector.broadcast %8 : vector<2x1xf32> to vector<2x2xf32>
    %10 = arith.subf %6, %9 : vector<2x2xf32>
    %11 = math.exp %10 : vector<2x2xf32>
    %cst_8 = arith.constant dense<0.000000e+00> : vector<2xf32>
    %12 = vector.multi_reduction <add>, %11, %cst_8 [1] : vector<2x2xf32> to vector<2xf32>
    %13 = vector.shape_cast %12 : vector<2xf32> to vector<2x1xf32>
    %14 = math.log %13 : vector<2x1xf32>
    %15 = vector.broadcast %14 : vector<2x1xf32> to vector<2x2xf32>
    %16 = arith.subf %10, %15 : vector<2x2xf32>
    %c0_9 = arith.constant 0 : index
    %c0_10 = arith.constant 0 : index
    %17 = vector.load %arg4[%c0_9, %c0_10] : memref<2x2xf32, #tpu.memory_space<vmem>>, vector<2x2xf32>
    tpu.vector_store %arg4[%c0_9, %c0_10], %16 {strides = array<i32>} : memref<2x2xf32, #tpu.memory_space<vmem>>, vector<2x2xf32>,
    return
  }
  func.func @transform_0(%arg0: i32) -> (i32, i32) {
    %c0_i32 = arith.constant 0 : i32
    %c0_i32_0 = arith.constant 0 : i32
    return %arg0, %c0_i32 : i32, i32
  }
  func.func @transform_1(%arg0: i32) -> (i32, i32) {
    %c0_i32 = arith.constant 0 : i32
    %c0_i32_0 = arith.constant 0 : i32
    %c0_i32_1 = arith.constant 0 : i32
    return %c0_i32, %c0_i32_0 : i32, i32
  }
  func.func @transform_2(%arg0: i32) -> (i32, i32) {
    %c0_i32 = arith.constant 0 : i32
    %c0_i32_0 = arith.constant 0 : i32
    %c0_i32_1 = arith.constant 0 : i32
    return %c0_i32, %c0_i32_0 : i32, i32
  }
  func.func @transform_3(%arg0: i32) -> (i32, i32) {
    %c0_i32 = arith.constant 0 : i32
    %c0_i32_0 = arith.constant 0 : i32
    return %arg0, %c0_i32 : i32, i32
  }
}

</mosaic_0001>

<llo_original>
// kernel: tpu_custom_call.1
$region0: #{tpu_custom_call.1}
  #allocation0 [shape = 'u32[]', space=smem, size = 0x4, offset = 0x4, fixed_abs, tag = 'smem constant byte address 0x4 - core index']
  #allocation1 [shape = 'u32[144,128]{1,0:T(1,128)}', space=vmem, size = 0x12000, scoped, tag = 'internal scratch']
  %s0 = inlined_call_operand.vmem [shape: f32[2,4], index: 0, kind: input, shape index: {}]
  %s1 = inlined_call_operand.vmem [shape: f32[4,128], index: 1, kind: input, shape index: {}]
  %s2 = inlined_call_operand.vmem [shape: f32[128,2], index: 2, kind: input, shape index: {}]
  %s3 = inlined_call_operand.hbm [shape: f32[2,2], index: 3, kind: output, shape index: {}]
  %s4 = sld [smem:[#allocation0]]
  $region22: #{tpu_custom_call.1} parent=0
    _
  %s6 = ssub.s32 1, %s4
  %s7 = scalar_select 0, %s6, %s4
  $region1: #{tpu_custom_call.1} parent=0
    #allocation2 [shape = 'u8[1024]{0}', space=vmem, size = 0x400, scoped, tag = 'output window, operand 0, single buffered']
    #allocation3 [shape = 's32[1]{0}', space=sflag, size = 0x4, scoped, tag = 'scoped memory for tpu_custom_call.1']
    %8 = vsyncpa [#allocation3], 0
    // Predicated region
    $region2: #{tpu_custom_call.1} parent=1 // pred_check
      _
    $region3: #{tpu_custom_call.1} parent=1 // pred_check_branch
      %10 = sbr.rel (0) target = $region5
    $region4: #{tpu_custom_call.1} parent=1 // pred_region
      _
    $region5: #{tpu_custom_call.1} parent=1 // pred_fallthru
      _
    // Predicated region
    $region6: #{tpu_custom_call.1} parent=1 // pred_check
      _
    $region7: #{tpu_custom_call.1} parent=1 // pred_check_branch
      %12 = sbr.rel (0) target = $region9
    $region8: #{tpu_custom_call.1} parent=1 // pred_region
      _
    $region9: #{tpu_custom_call.1} parent=1 // pred_fallthru
      _
    // Predicated region
    $region10: #{tpu_custom_call.1} parent=1 // pred_check
      _
    $region11: #{tpu_custom_call.1} parent=1 // pred_check_branch
      %14 = sbr.rel (0) target = $region13
    $region12: #{tpu_custom_call.1} parent=1 // pred_region
      _
    $region13: #{tpu_custom_call.1} parent=1 // pred_fallthru
      _
    %v15 = vld [vmem:[%s0] sm:$0x3]
    %v16 = vld [vmem:[%s1] sm:$0xf]
    %vm17 = vcmask 31744
    %v19 = vsel %vm17, %v15, 0
    %vm21 = vcmask 1043456
    %v23 = vsel %vm21, %v16, 0
    %25 = vmatprep.subr.mxu0 0.0
    %26 = vmatpush1.msra.mxu0 %v23
    %27 = vmatprep.subr.mxu0 0.0
    %28 = vmatpush1.msra.mxu0 0.0
    %29 = vmatprep.subr.mxu0 0.0
    %30 = vmatpush1.msra.mxu0 0.0
    %31 = vmatprep.subr.mxu0 0.0
    %32 = vmatpush1.msra.mxu0 0.0
    %33 = vmatprep.subr.mxu0 0.0
    %34 = vmatpush1.msra.mxu0 0.0
    %35 = vmatprep.subr.mxu0 0.0
    %36 = vmatpush1.msra.mxu0 0.0
    %37 = vmatprep.subr.mxu0 0.0
    %38 = vmatpush1.msra.mxu0 0.0
    %39 = vmatprep.subr.mxu0 0.0
    %40 = vmatpush1.msra.mxu0 0.0
    %41 = vmatprep.subr.mxu0 0.0
    %42 = vmatpush1.msra.mxu0 0.0
    %43 = vmatprep.subr.mxu0 0.0
    %44 = vmatpush1.msra.mxu0 0.0
    %45 = vmatprep.subr.mxu0 0.0
    %46 = vmatpush1.msra.mxu0 0.0
    %47 = vmatprep.subr.mxu0 0.0
    %48 = vmatpush1.msra.mxu0 0.0
    %49 = vmatprep.subr.mxu0 0.0
    %50 = vmatpush1.msra.mxu0 0.0
    %51 = vmatprep.subr.mxu0 0.0
    %52 = vmatpush1.msra.mxu0 0.0
    %53 = vmatprep.subr.mxu0 0.0
    %54 = vmatpush1.msra.mxu0 0.0
    %55 = vmatprep.subr.mxu0 0.0
    %56 = vmatpush1.msra.mxu0 0.0
    %57 = vmatprep.subr.mxu0 0.0
    %58 = vmatpush1.msra.mxu0 0.0
    %59 = vmatprep.subr.mxu0 0.0
    %60 = vmatpush1.msra.mxu0 0.0
    %61 = vmatprep.subr.mxu0 0.0
    %62 = vmatpush1.msra.mxu0 0.0
    %63 = vmatprep.subr.mxu0 0.0
    %64 = vmatpush1.msra.mxu0 0.0
    %65 = vmatprep.subr.mxu0 0.0
    %66 = vmatpush1.msra.mxu0 0.0
    %67 = vmatprep.subr.mxu0 0.0
    %68 = vmatpush1.msra.mxu0 0.0
    %69 = vmatprep.subr.mxu0 0.0
    %70 = vmatpush1.msra.mxu0 0.0
    %71 = vmatprep.subr.mxu0 0.0
    %72 = vmatpush1.msra.mxu0 0.0
    %73 = vmatprep.subr.mxu0 0.0
    %74 = vmatpush1.msra.mxu0 0.0
    %75 = vmatprep.subr.mxu0 0.0
    %76 = vmatpush1.msra.mxu0 0.0
    %77 = vmatprep.subr.mxu0 0.0
    %78 = vmatpush1.msra.mxu0 0.0
    %79 = vmatprep.subr.mxu0 0.0
    %80 = vmatpush1.msra.mxu0 0.0
    %81 = vmatprep.subr.mxu0 0.0
    %82 = vmatpush1.msra.mxu0 0.0
    %83 = vmatprep.subr.mxu0 0.0
    %84 = vmatpush1.msra.mxu0 0.0
    %85 = vmatprep.subr.mxu0 0.0
    %86 = vmatpush1.msra.mxu0 0.0
    %87 = vmatprep.subr.mxu0 0.0
    %88 = vmatpush1.msra.mxu0 0.0
    %89 = vmatprep.mubr.f32.mxu0 0.0
    %90 = vmatmul.mubr.f32.gmra.mrb[0].mxu0 %v19
    %v91 = vpop.f32.mrb[0].mxu0
    %v92 = vadd.f32 0.0, %v91
    %v93 = vpop.f32.mrb[0].mxu0
    %94 = vdwg.mxu0
    %v95 = vmax.f32 %v92, 0.0
    %v96 = vld [vmem:[%s2] sm:$0xff]
    %v97 = vld [vmem:[%s2 + $0x8] sm:$0xff]
    %v98 = vld [vmem:[%s2 + $0x10] sm:$0xff]
    %v99 = vld [vmem:[%s2 + $0x18] sm:$0xff]
    %v100 = vld [vmem:[%s2 + $0x20] sm:$0xff]
    %v101 = vld [vmem:[%s2 + $0x28] sm:$0xff]
    %v102 = vld [vmem:[%s2 + $0x30] sm:$0xff]
    %v103 = vld [vmem:[%s2 + $0x38] sm:$0xff]
    %v104 = vld [vmem:[%s2 + $0x40] sm:$0xff]
    %v105 = vld [vmem:[%s2 + $0x48] sm:$0xff]
    %v106 = vld [vmem:[%s2 + $0x50] sm:$0xff]
    %v107 = vld [vmem:[%s2 + $0x58] sm:$0xff]
    %v108 = vld [vmem:[%s2 + $0x60] sm:$0xff]
    %v109 = vld [vmem:[%s2 + $0x68] sm:$0xff]
    %v110 = vld [vmem:[%s2 + $0x70] sm:$0xff]
    %v111 = vld [vmem:[%s2 + $0x78] sm:$0xff]
    %112 = vmatprep.subr.mxu0 0.0
    %113 = vmatpush1.msra.mxu0 %v96
    %114 = vmatprep.subr.mxu0 0.0
    %115 = vmatpush1.msra.mxu0 %v97
    %116 = vmatprep.subr.mxu0 0.0
    %117 = vmatpush1.msra.mxu0 %v98
    %118 = vmatprep.subr.mxu0 0.0
    %119 = vmatpush1.msra.mxu0 %v99
    %120 = vmatprep.subr.mxu0 0.0
    %121 = vmatpush1.msra.mxu0 %v100
    %122 = vmatprep.subr.mxu0 0.0
    %123 = vmatpush1.msra.mxu0 %v101
    %124 = vmatprep.subr.mxu0 0.0
    %125 = vmatpush1.msra.mxu0 %v102
    %126 = vmatprep.subr.mxu0 0.0
    %127 = vmatpush1.msra.mxu0 %v103
    %128 = vmatprep.subr.mxu0 0.0
    %129 = vmatpush1.msra.mxu0 %v104
    %130 = vmatprep.subr.mxu0 0.0
    %131 = vmatpush1.msra.mxu0 %v105
    %132 = vmatprep.subr.mxu0 0.0
    %133 = vmatpush1.msra.mxu0 %v106
    %134 = vmatprep.subr.mxu0 0.0
    %135 = vmatpush1.msra.mxu0 %v107
    %136 = vmatprep.subr.mxu0 0.0
    %137 = vmatpush1.msra.mxu0 %v108
    %138 = vmatprep.subr.mxu0 0.0
    %139 = vmatpush1.msra.mxu0 %v109
    %140 = vmatprep.subr.mxu0 0.0
    %141 = vmatpush1.msra.mxu0 %v110
    %142 = vmatprep.subr.mxu0 0.0
    %143 = vmatpush1.msra.mxu0 %v111
    %144 = vmatprep.subr.mxu0 0.0
    %145 = vmatpush1.msra.mxu0 0.0
    %146 = vmatprep.subr.mxu0 0.0
    %147 = vmatpush1.msra.mxu0 0.0
    %148 = vmatprep.subr.mxu0 0.0
    %149 = vmatpush1.msra.mxu0 0.0
    %150 = vmatprep.subr.mxu0 0.0
    %151 = vmatpush1.msra.mxu0 0.0
    %152 = vmatprep.subr.mxu0 0.0
    %153 = vmatpush1.msra.mxu0 0.0
    %154 = vmatprep.subr.mxu0 0.0
    %155 = vmatpush1.msra.mxu0 0.0
    %156 = vmatprep.subr.mxu0 0.0
    %157 = vmatpush1.msra.mxu0 0.0
    %158 = vmatprep.subr.mxu0 0.0
    %159 = vmatpush1.msra.mxu0 0.0
    %160 = vmatprep.subr.mxu0 0.0
    %161 = vmatpush1.msra.mxu0 0.0
    %162 = vmatprep.subr.mxu0 0.0
    %163 = vmatpush1.msra.mxu0 0.0
    %164 = vmatprep.subr.mxu0 0.0
    %165 = vmatpush1.msra.mxu0 0.0
    %166 = vmatprep.subr.mxu0 0.0
    %167 = vmatpush1.msra.mxu0 0.0
    %168 = vmatprep.subr.mxu0 0.0
    %169 = vmatpush1.msra.mxu0 0.0
    %170 = vmatprep.subr.mxu0 0.0
    %171 = vmatpush1.msra.mxu0 0.0
    %172 = vmatprep.subr.mxu0 0.0
    %173 = vmatpush1.msra.mxu0 0.0
    %174 = vmatprep.subr.mxu0 0.0
    %175 = vmatpush1.msra.mxu0 0.0
    %176 = vmatprep.mubr.f32.mxu0 0.0
    %177 = vmatmul.mubr.f32.gmra.mrb[0].mxu0 %v95
    %v178 = vpop.f32.mrb[0].mxu0
    %v179 = vadd.f32 0.0, %v178
    %v180 = vpop.f32.mrb[0].mxu0
    %181 = vdwg.mxu0
    %vm182 = vcmask 9216
    %v183 = vsel %vm182, %v179, -inf
    %184 = vmax.xlane.f32.xlu0 %v183
    %v185 = vpop.xlane.xlu0 %184
    %v186 = vsub.f32 %v179, %v185
    %v187 = vmul.f32 %v186, 1.442695
    %v188 = vpow.pop %v187
    %v189 = vsel %vm182, %v188, 0.0
    %190 = vadd.xlane.f32.xlu0 %v189
    %v191 = vpop.xlane.xlu0 %190
    %v192 = vlog2.pop %v191
    %v193 = vmul.f32 %v192, 0.6931472
    %v194 = vsub.f32 %v186, %v193
    %195 = vst.msk [vmem:[#allocation2] sm:$0x3] %vm182, %v194
    // Predicated region
    $region14: #{tpu_custom_call.1} parent=1 // pred_check
      _
    $region15: #{tpu_custom_call.1} parent=1 // pred_check_branch
      %197 = sbr.rel (0) target = $region17
    $region16: #{tpu_custom_call.1} parent=1 // pred_region
      %s199 = ssub.s32 32, 32
      %200 = vsyncadd [#allocation3], %s199
      %s202 = sshll.u32 [#allocation2], 4
      %s203 = int_to_ptr.vmem [resolvable:$true] %s202
      %205 = dma.vmem_to_hbm [thread:$0]  %s203, 32, %s3, [#allocation3]
    $region17: #{tpu_custom_call.1} parent=1 // pred_fallthru
      _
    // Predicated region
    $region18: #{tpu_custom_call.1} parent=1 // pred_check
      _
    $region19: #{tpu_custom_call.1} parent=1 // pred_check_branch
      %207 = sbr.rel (0) target = $region21
    $region20: #{tpu_custom_call.1} parent=1 // pred_region
      %208 = dma.done [#allocation3], 32
    $region21: #{tpu_custom_call.1} parent=1 // pred_fallthru
      _
    %209 = vsyncpa [#allocation3], 1

</llo_original>
